<compile_context>
chip_gen: v7x
topology: tpu7x:2x2x1
jax: 0.10.0
libtpu: 0.0.40
codegen_flags: <defaults>
</compile_context>

<pallas_src>
import jax
import jax.numpy as jnp
from jax.experimental import pallas as pl
from jax.experimental.pallas import tpu as pltpu

_LANES = 128
_MAX_INFLIGHT_DMAS = 4        # concurrent HBM->HBM transfers for large arrays
_MIN_CHUNK_BYTES = 4 << 20    # don't split below ~4 MiB per chunk
_TINY_BYTES = 1 << 20         # below this, native XLA copy beats a kernel launch


def _make_dma_copy_kernel(chunk_starts, chunk_rows):
    """Build a kernel copying src -> dst with len(chunk_starts) direct
    HBM->HBM DMAs.  All DMAs are started before any wait, so up to
    len(chunk_starts) transfers are in flight concurrently."""
    n = len(chunk_starts)

    def kernel(x_ref, o_ref, sems):
        copies = []
        for c in range(n):                      # static Python loop
            if n == 1:
                src, dst = x_ref, o_ref         # whole-array single DMA
            else:
                s, r = chunk_starts[c], chunk_rows[c]
                src = x_ref.at[pl.ds(s, r)]     # static slice of HBM ref
                dst = o_ref.at[pl.ds(s, r)]
            cp = pltpu.make_async_copy(src, dst, sems.at[c])
            cp.start()
            copies.append(cp)
        for cp in copies:
            cp.wait()

    return kernel


def _pallas_identity_copy(x: jax.Array) -> jax.Array:
    """Materialized identity copy via direct HBM->HBM DMA (no VMEM staging)."""
    orig_shape = x.shape
    total = x.size
    if total == 0:
        return x

    # Present the data as (rows, 128) when possible (cosmetic for a DMA copy;
    # keeps the common case on the most well-trodden layout and gives a clean
    # leading axis to chunk along); otherwise copy the original-shaped array
    # with one whole-array DMA.
    if total % _LANES == 0 and total // _LANES > 1:
        work = x.reshape(total // _LANES, _LANES)
    else:
        work = x
    rows = work.shape[0]

    # Split into a few equal row chunks so several DMAs are in flight; never
    # split below _MIN_CHUNK_BYTES per chunk and never below 1 row per chunk.
    bytes_total = total * jnp.dtype(x.dtype).itemsize
    n_chunks = int(max(1, min(_MAX_INFLIGHT_DMAS,
                              bytes_total // _MIN_CHUNK_BYTES, rows)))
    if n_chunks > 1:
        base = pl.cdiv(rows, n_chunks)
        chunk_starts, chunk_rows = [], []
        r0 = 0
        while r0 < rows:
            nr = min(base, rows - r0)
            chunk_starts.append(r0)
            chunk_rows.append(nr)
            r0 += nr
    else:
        chunk_starts, chunk_rows = [0], [rows]
    n_chunks = len(chunk_starts)

    out = pl.pallas_call(
        _make_dma_copy_kernel(tuple(chunk_starts), tuple(chunk_rows)),
        out_shape=jax.ShapeDtypeStruct(work.shape, work.dtype),
        in_specs=[pl.BlockSpec(memory_space=pl.ANY)],   # raw HBM ref, no auto-DMA
        out_specs=pl.BlockSpec(memory_space=pl.ANY),    # output stays in HBM
        scratch_shapes=[pltpu.SemaphoreType.DMA((n_chunks,))],
        cost_estimate=pl.CostEstimate(flops=0, transcendentals=0,
                                      bytes_accessed=2 * bytes_total),
    )(work)
    return out.reshape(orig_shape) if out.shape != orig_shape else out


def pre_module_synch_forward(hidden_states: jax.Array, *,
                             materialize: bool = False,
                             min_kernel_bytes: int = _TINY_BYTES) -> jax.Array:
    """Forward pass of PreModuleSynch: a pure identity.

    Default is zero-copy (return the input untouched -- an identity's best
    kernel is no kernel, zero HBM traffic).  materialize=True returns a
    distinct, freshly written output buffer; inputs smaller than
    `min_kernel_bytes` use XLA's native copy instead of paying a kernel
    launch + DMA-issue latency.
    """
    if not materialize:
        return hidden_states
    nbytes = hidden_states.size * jnp.dtype(hidden_states.dtype).itemsize
    if nbytes < min_kernel_bytes:
        return jnp.copy(hidden_states)
    return _pallas_identity_copy(hidden_states)


def init_params(key):
    """Deterministically initialize the (unused) nn.Linear(1, 1) parameters,
    matching the module's __init__ shapes (they never enter the forward)."""
    kw, kb = jax.random.split(key)
    # nn.Linear(1,1): weight (1,1), bias (1,), uniform(-b, b) with b = 1/sqrt(1)
    weight = jax.random.uniform(kw, (1, 1), jnp.float32, -1.0, 1.0)
    bias = jax.random.uniform(kb, (1,), jnp.float32, -1.0, 1.0)
    return {"linear": {"weight": weight, "bias": bias}}


if __name__ == "__main__":
    key = jax.random.PRNGKey(0)
    k_param, k_x = jax.random.split(key)

    # Parameters are initialized (per module __init__) but, exactly like the
    # PyTorch forward, they are not used.
    params = init_params(k_param)  # noqa: F841

    # Small hidden_states: (batch=2, seq=8, hidden=32)
    hidden_states = jax.random.normal(k_x, (2, 8, 32), dtype=jnp.float32)
    expected = jnp.array(hidden_states)  # independent copy for verification

    # Zero-copy forward (module semantics; no HBM traffic).
    out_fast = pre_module_synch_forward(hidden_states)

    # Kernel-backed forward (direct HBM->HBM DMA copy) -- force the Pallas
    # path even though the demo input is tiny, and run it once.
    out_kernel = pre_module_synch_forward(hidden_states, materialize=True,
                                          min_kernel_bytes=0)
    out_kernel = jax.block_until_ready(out_kernel)

    # Verify identity semantics exactly.
    assert out_fast.shape == expected.shape and out_fast.dtype == expected.dtype
    assert out_kernel.shape == expected.shape and out_kernel.dtype == expected.dtype
    assert bool(jnp.array_equal(out_fast, expected))
    assert bool(jnp.array_equal(out_kernel, expected))

    print("KERNEL_OK")
</pallas_src>

<mosaic_0001>
module attributes {stable_mosaic.version = 11 : i64} {
  func.func @kernel(%arg0: memref<4x128xf32, #tpu.memory_space<any>>, %arg1: memref<4x128xf32, #tpu.memory_space<any>>, %arg2: memref<1x!tpu.dma_semaphore, #tpu.memory_space<semaphore_mem>>) attributes {dimension_semantics = [], scalar_prefetch = 0 : i64, scratch_operands = 1 : i64, tpu.core_type = #tpu.core_type<tc>} {
    %c0_i32 = arith.constant 0 : i32
    %0 = tpu.memref_slice %arg2[%c0_i32] : memref<1x!tpu.dma_semaphore, #tpu.memory_space<semaphore_mem>> -> memref<1x!tpu.dma_semaphore, #tpu.memory_space<semaphore_mem>>
    %1 = tpu.memref_squeeze %0 : memref<1x!tpu.dma_semaphore, #tpu.memory_space<semaphore_mem>> -> memref<!tpu.dma_semaphore, #tpu.memory_space<semaphore_mem>>
    tpu.enqueue_dma source(%arg0 : memref<4x128xf32, #tpu.memory_space<any>>) target(%arg1 : memref<4x128xf32, #tpu.memory_space<any>>) target_semaphore(%1 : memref<!tpu.dma_semaphore, #tpu.memory_space<semaphore_mem>>)
    %c0_i32_0 = arith.constant 0 : i32
    %2 = tpu.memref_slice %arg2[%c0_i32_0] : memref<1x!tpu.dma_semaphore, #tpu.memory_space<semaphore_mem>> -> memref<1x!tpu.dma_semaphore, #tpu.memory_space<semaphore_mem>>
    %3 = tpu.memref_squeeze %2 : memref<1x!tpu.dma_semaphore, #tpu.memory_space<semaphore_mem>> -> memref<!tpu.dma_semaphore, #tpu.memory_space<semaphore_mem>>
    tpu.wait_dma2 semaphore(%3 : memref<!tpu.dma_semaphore, #tpu.memory_space<semaphore_mem>>) src(%arg0 : memref<4x128xf32, #tpu.memory_space<any>>) dst(%arg1 : memref<4x128xf32, #tpu.memory_space<any>>)
    return
  }
}

</mosaic_0001>

<llo_original>
// kernel: tpu_custom_call.1
$region0: #{tpu_custom_call.1}
  #allocation0 [shape = 'u32[]', space=smem, size = 0x4, offset = 0x4, fixed_abs, tag = 'smem constant byte address 0x4 - core index']
  #allocation1 [shape = 'u32[144,128]{1,0:T(1,128)}', space=vmem, size = 0x12000, scoped, tag = 'internal scratch']
  #allocation2 [shape = 's32[1]{0}', space=sflag, size = 0x4, scoped, tag = 'scratch operand']
  #allocation3 [shape = 's32[]', space=sflag, size = 0x4, offset = 0, fixed_abs, tag = 'sflag constant byte address 0x0 - dummy sync flag']
  #allocation4 [shape = 'u32[0]{0}', space=smem, size = 0, offset = 0, fixed_abs, tag = 'smem constant byte address 0x0 - null']
  %s0 = inlined_call_operand.hbm [shape: f32[4,128], index: 0, kind: input, shape index: {}]
  %s1 = inlined_call_operand.hbm [shape: f32[4,128], index: 1, kind: output, shape index: {}]
  %s2 = sld [smem:[#allocation0]]
  $region2: #{tpu_custom_call.1} parent=0
    _
  %s4 = ssub.s32 1, %s2
  %s5 = scalar_select 0, %s4, %s2
  %s7 = sshll.u32 1, 14
  %s8 = sxor.u32 4294967295, %s7
  %s11 = sshll.u32 3, 24
  %s12 = sxor.u32 4294967295, %s11
  %s13 = sand.u32 0, %s12
  %s15 = sor.u32 %s13, 0
  %18 = dma.general %s0, 64, %s1, [#allocation2], [#allocation3], [#allocation4], %s15, 0
  %s19 = smul.u32 4, 1
  %s20 = sshll.u32 %s19, 4
  %21 = dma.done [#allocation2], %s20
  %22 = vsyncmov [#allocation2]
  %s23 = vpop.sfrf %22
  %p24 = scmp.eq.s32.totalorder %s23, 0
  %p25 = pneg %p24
  %27 = shalt.err (%p25)

</llo_original>
